<compile_context>
chip_gen: v5e
topology: v5e:2x2
jax: 0.10.0
libtpu: 0.0.40
codegen_flags: <defaults>
</compile_context>

<pallas_src>
import jax
import jax.numpy as jnp
from jax.experimental import pallas as pl
from jax.experimental.pallas import tpu as pltpu

IN_DIM = 80
H1 = 64
H2 = 32
OUT = 32


def siamese_mlp_kernel(x1_ref, x2_ref,
                       w1_ref, b1_ref,
                       w2_ref, b2_ref,
                       w3_ref, b3_ref,
                       o_ref):
    """One grid step: encode a (tb, 80) tile of BOTH branches in a single pass.

    The two branch tiles are stacked on the sublane axis -> one matmul chain of
    shape (2*tb, .); the result is split and written lane-dense into a single
    (tb, 64) output block."""
    tb = x1_ref.shape[0]

    # Fuse the two siamese branches on the row (sublane) axis: (2*tb, IN_DIM).
    x = jnp.concatenate([x1_ref[...], x2_ref[...]], axis=0).astype(jnp.float32)

    h = jnp.dot(x, w1_ref[...], preferred_element_type=jnp.float32) + b1_ref[...]
    h = jnp.maximum(h, 0.0)          # ReLU (Dropout is identity at inference)
    h = jnp.dot(h, w2_ref[...], preferred_element_type=jnp.float32) + b2_ref[...]
    h = jnp.maximum(h, 0.0)
    y = jnp.dot(h, w3_ref[...], preferred_element_type=jnp.float32) + b3_ref[...]

    # Lane-dense merged output: branch1 -> lanes [0, OUT), branch2 -> [OUT, 2*OUT).
    o_ref[:, :OUT] = y[:tb].astype(o_ref.dtype)
    o_ref[:, OUT:] = y[tb:].astype(o_ref.dtype)


def _pick_batch_tile(B):
    """Largest power-of-two tile (<=1024, multiple of 8) dividing the batch."""
    for t in (1024, 512, 256, 128, 64, 32, 16, 8):
        if B % t == 0:
            return t
    return B   # tiny / odd batch: fall back to a single full-array block


def siamese_forward(x1, x2, params, *, batch_tile=None, out_dtype=None):
    """params = dict with w1,b1,w2,b2,w3,b3 (weights stored as (in, out))."""
    assert x1.shape == x2.shape and x1.shape[1] == IN_DIM
    B = x1.shape[0]
    tb = batch_tile or _pick_batch_tile(B)
    assert B % tb == 0, "batch must be divisible by the batch tile"
    assert tb % 8 == 0 or tb == B, "batch tile must be a multiple of 8 (sublane)"
    out_dtype = out_dtype or x1.dtype
    grid = (B // tb,)

    # Weight / bias blocks: same (only) block at every grid step -> fetched
    # once, stays resident in VMEM (no per-step re-DMA).
    def rep(shape):
        return pl.BlockSpec(shape, lambda i: (0, 0))

    x_spec = pl.BlockSpec((tb, IN_DIM), lambda i: (i, 0))
    o_spec = pl.BlockSpec((tb, 2 * OUT), lambda i: (i, 0))

    out = pl.pallas_call(
        siamese_mlp_kernel,
        out_shape=jax.ShapeDtypeStruct((B, 2 * OUT), out_dtype),
        grid_spec=pltpu.PrefetchScalarGridSpec(
            num_scalar_prefetch=0,
            grid=grid,
            in_specs=[
                x_spec, x_spec,
                rep((IN_DIM, H1)), rep((1, H1)),
                rep((H1, H2)), rep((1, H2)),
                rep((H2, OUT)), rep((1, OUT)),
            ],
            out_specs=o_spec,
        ),
        compiler_params=pltpu.CompilerParams(
            dimension_semantics=("parallel",)),   # batch axis -> megacore shard
    )(x1, x2,
      params["w1"], params["b1"],
      params["w2"], params["b2"],
      params["w3"], params["b3"])

    return out[:, :OUT], out[:, OUT:]


def init_params(key):
    """Deterministic init mimicking PyTorch Linear's U(-1/sqrt(fan_in), +...)."""
    ks = jax.random.split(key, 6)

    def linear(kw, kb, fan_in, fan_out):
        bound = 1.0 / jnp.sqrt(fan_in)
        # stored as (in, out)  == torch_weight.T
        w = jax.random.uniform(kw, (fan_in, fan_out), jnp.float32, -bound, bound)
        b = jax.random.uniform(kb, (1, fan_out), jnp.float32, -bound, bound)
        return w, b

    w1, b1 = linear(ks[0], ks[1], IN_DIM, H1)
    w2, b2 = linear(ks[2], ks[3], H1, H2)
    w3, b3 = linear(ks[4], ks[5], H2, OUT)
    return {"w1": w1, "b1": b1, "w2": w2, "b2": b2, "w3": w3, "b3": b3}


def reference_forward(x1, x2, p):
    def enc(x):
        h = jnp.maximum(x @ p["w1"] + p["b1"], 0.0)
        h = jnp.maximum(h @ p["w2"] + p["b2"], 0.0)
        return h @ p["w3"] + p["b3"]
    return enc(x1), enc(x2)


if __name__ == "__main__":
    key = jax.random.PRNGKey(0)
    kp, k1, k2 = jax.random.split(key, 3)

    B = 16
    params = init_params(kp)
    x1 = jax.random.normal(k1, (B, IN_DIM), jnp.float32)
    x2 = jax.random.normal(k2, (B, IN_DIM), jnp.float32)

    # f32 path — batch_tile=8 gives a 2-step grid (pipelining + 2 TCs on v7x).
    o1, o2 = siamese_forward(x1, x2, params, batch_tile=8)
    jax.block_until_ready((o1, o2))

    r1, r2 = reference_forward(x1, x2, params)
    assert o1.shape == (B, OUT) and o2.shape == (B, OUT)
    assert jnp.allclose(o1, r1, atol=1e-5, rtol=1e-5)
    assert jnp.allclose(o2, r2, atol=1e-5, rtol=1e-5)

    # bf16 activation/output path (halves HBM traffic for the mem-bound kernel;
    # compute/accumulation stays f32 inside the kernel).
    x1b = x1.astype(jnp.bfloat16)
    x2b = x2.astype(jnp.bfloat16)
    o1b, o2b = siamese_forward(x1b, x2b, params, batch_tile=8)
    jax.block_until_ready((o1b, o2b))

    r1b, r2b = reference_forward(x1b.astype(jnp.float32), x2b.astype(jnp.float32), params)
    assert o1b.dtype == jnp.bfloat16 and o2b.dtype == jnp.bfloat16
    assert jnp.allclose(o1b.astype(jnp.float32), r1b, atol=2e-2, rtol=2e-2)
    assert jnp.allclose(o2b.astype(jnp.float32), r2b, atol=2e-2, rtol=2e-2)

    print("KERNEL_OK")
</pallas_src>

<mosaic_0001>
module attributes {stable_mosaic.version = 11 : i64} {
  func.func @siamese_mlp_kernel(%arg0: i32, %arg1: memref<8x80xf32, #tpu.memory_space<vmem>>, %arg2: memref<8x80xf32, #tpu.memory_space<vmem>>, %arg3: memref<80x64xf32, #tpu.memory_space<vmem>>, %arg4: memref<1x64xf32, #tpu.memory_space<vmem>>, %arg5: memref<64x32xf32, #tpu.memory_space<vmem>>, %arg6: memref<1x32xf32, #tpu.memory_space<vmem>>, %arg7: memref<32x32xf32, #tpu.memory_space<vmem>>, %arg8: memref<1x32xf32, #tpu.memory_space<vmem>>, %arg9: memref<8x64xf32, #tpu.memory_space<vmem>>) attributes {dimension_semantics = [#tpu.dimension_semantics<parallel>], iteration_bounds = array<i64: 2>, scalar_prefetch = 0 : i64, scratch_operands = 0 : i64, tpu.core_type = #tpu.core_type<tc>, window_params = [{transform_indices = @transform_0, window_bounds = array<i64: 8, 80>}, {transform_indices = @transform_1, window_bounds = array<i64: 8, 80>}, {pipeline_mode = #tpu.pipeline_mode<synchronous>, transform_indices = @transform_2, window_bounds = array<i64: 80, 64>}, {pipeline_mode = #tpu.pipeline_mode<synchronous>, transform_indices = @transform_3, window_bounds = array<i64: 1, 64>}, {pipeline_mode = #tpu.pipeline_mode<synchronous>, transform_indices = @transform_4, window_bounds = array<i64: 64, 32>}, {pipeline_mode = #tpu.pipeline_mode<synchronous>, transform_indices = @transform_5, window_bounds = array<i64: 1, 32>}, {pipeline_mode = #tpu.pipeline_mode<synchronous>, transform_indices = @transform_6, window_bounds = array<i64: 32, 32>}, {pipeline_mode = #tpu.pipeline_mode<synchronous>, transform_indices = @transform_7, window_bounds = array<i64: 1, 32>}, {transform_indices = @transform_8, window_bounds = array<i64: 8, 64>}]} {
    %c0 = arith.constant 0 : index
    %c0_0 = arith.constant 0 : index
    %0 = vector.load %arg1[%c0, %c0_0] : memref<8x80xf32, #tpu.memory_space<vmem>>, vector<8x80xf32>
    %c0_1 = arith.constant 0 : index
    %c0_2 = arith.constant 0 : index
    %1 = vector.load %arg2[%c0_1, %c0_2] : memref<8x80xf32, #tpu.memory_space<vmem>>, vector<8x80xf32>
    %2 = tpu.concatenate %0, %1 in 0 : vector<8x80xf32>, vector<8x80xf32> -> vector<16x80xf32>
    %c0_3 = arith.constant 0 : index
    %c0_4 = arith.constant 0 : index
    %3 = vector.load %arg3[%c0_3, %c0_4] : memref<80x64xf32, #tpu.memory_space<vmem>>, vector<80x64xf32>
    %cst = arith.constant dense<0.000000e+00> : vector<16x64xf32>
    %4 = tpu.matmul %2, %3, %cst {dimension_numbers = #tpu.dot_dimension_numbers<[1], [0], [0], [1], [0, 0, 1, 1], [], []>} : vector<16x80xf32>, vector<80x64xf32>, vector<16x64xf32> -> vector<16x64xf32>
    %c0_5 = arith.constant 0 : index
    %c0_6 = arith.constant 0 : index
    %5 = vector.load %arg4[%c0_5, %c0_6] : memref<1x64xf32, #tpu.memory_space<vmem>>, vector<1x64xf32>
    %6 = vector.broadcast %5 : vector<1x64xf32> to vector<16x64xf32>
    %7 = arith.addf %4, %6 : vector<16x64xf32>
    %cst_7 = arith.constant 0.000000e+00 : f32
    %8 = vector.broadcast %cst_7 : f32 to vector<16x64xf32>
    %9 = arith.maximumf %7, %8 : vector<16x64xf32>
    %c0_8 = arith.constant 0 : index
    %c0_9 = arith.constant 0 : index
    %10 = vector.load %arg5[%c0_8, %c0_9] : memref<64x32xf32, #tpu.memory_space<vmem>>, vector<64x32xf32>
    %cst_10 = arith.constant dense<0.000000e+00> : vector<16x32xf32>
    %11 = tpu.matmul %9, %10, %cst_10 {dimension_numbers = #tpu.dot_dimension_numbers<[1], [0], [0], [1], [0, 0, 1, 1], [], []>} : vector<16x64xf32>, vector<64x32xf32>, vector<16x32xf32> -> vector<16x32xf32>
    %c0_11 = arith.constant 0 : index
    %c0_12 = arith.constant 0 : index
    %12 = vector.load %arg6[%c0_11, %c0_12] : memref<1x32xf32, #tpu.memory_space<vmem>>, vector<1x32xf32>
    %13 = vector.broadcast %12 : vector<1x32xf32> to vector<16x32xf32>
    %14 = arith.addf %11, %13 : vector<16x32xf32>
    %cst_13 = arith.constant 0.000000e+00 : f32
    %15 = vector.broadcast %cst_13 : f32 to vector<16x32xf32>
    %16 = arith.maximumf %14, %15 : vector<16x32xf32>
    %c0_14 = arith.constant 0 : index
    %c0_15 = arith.constant 0 : index
    %17 = vector.load %arg7[%c0_14, %c0_15] : memref<32x32xf32, #tpu.memory_space<vmem>>, vector<32x32xf32>
    %cst_16 = arith.constant dense<0.000000e+00> : vector<16x32xf32>
    %18 = tpu.matmul %16, %17, %cst_16 {dimension_numbers = #tpu.dot_dimension_numbers<[1], [0], [0], [1], [0, 0, 1, 1], [], []>} : vector<16x32xf32>, vector<32x32xf32>, vector<16x32xf32> -> vector<16x32xf32>
    %c0_17 = arith.constant 0 : index
    %c0_18 = arith.constant 0 : index
    %19 = vector.load %arg8[%c0_17, %c0_18] : memref<1x32xf32, #tpu.memory_space<vmem>>, vector<1x32xf32>
    %20 = vector.broadcast %19 : vector<1x32xf32> to vector<16x32xf32>
    %21 = arith.addf %18, %20 : vector<16x32xf32>
    %22 = vector.extract_strided_slice %21 {offsets = [0, 0], sizes = [8, 32], strides = [1, 1]} : vector<16x32xf32> to vector<8x32xf32>
    %c0_19 = arith.constant 0 : index
    %c0_20 = arith.constant 0 : index
    %23 = vector.load %arg9[%c0_19, %c0_20] : memref<8x64xf32, #tpu.memory_space<vmem>>, vector<8x32xf32>
    tpu.vector_store %arg9[%c0_19, %c0_20], %22 {strides = array<i32>} : memref<8x64xf32, #tpu.memory_space<vmem>>, vector<8x32xf32>,
    %24 = vector.extract_strided_slice %21 {offsets = [8, 0], sizes = [8, 32], strides = [1, 1]} : vector<16x32xf32> to vector<8x32xf32>
    %c0_21 = arith.constant 0 : index
    %c32 = arith.constant 32 : index
    %25 = vector.load %arg9[%c0_21, %c32] : memref<8x64xf32, #tpu.memory_space<vmem>>, vector<8x32xf32>
    tpu.vector_store %arg9[%c0_21, %c32], %24 {strides = array<i32>} : memref<8x64xf32, #tpu.memory_space<vmem>>, vector<8x32xf32>,
    return
  }
  func.func @transform_0(%arg0: i32) -> (i32, i32) {
    %c0_i32 = arith.constant 0 : i32
    %c0_i32_0 = arith.constant 0 : i32
    return %arg0, %c0_i32 : i32, i32
  }
  func.func @transform_1(%arg0: i32) -> (i32, i32) {
    %c0_i32 = arith.constant 0 : i32
    %c0_i32_0 = arith.constant 0 : i32
    return %arg0, %c0_i32 : i32, i32
  }
  func.func @transform_2(%arg0: i32) -> (i32, i32) {
    %c0_i32 = arith.constant 0 : i32
    %c0_i32_0 = arith.constant 0 : i32
    %c0_i32_1 = arith.constant 0 : i32
    return %c0_i32, %c0_i32_0 : i32, i32
  }
  func.func @transform_3(%arg0: i32) -> (i32, i32) {
    %c0_i32 = arith.constant 0 : i32
    %c0_i32_0 = arith.constant 0 : i32
    %c0_i32_1 = arith.constant 0 : i32
    return %c0_i32, %c0_i32_0 : i32, i32
  }
  func.func @transform_4(%arg0: i32) -> (i32, i32) {
    %c0_i32 = arith.constant 0 : i32
    %c0_i32_0 = arith.constant 0 : i32
    %c0_i32_1 = arith.constant 0 : i32
    return %c0_i32, %c0_i32_0 : i32, i32
  }
  func.func @transform_5(%arg0: i32) -> (i32, i32) {
    %c0_i32 = arith.constant 0 : i32
    %c0_i32_0 = arith.constant 0 : i32
    %c0_i32_1 = arith.constant 0 : i32
    return %c0_i32, %c0_i32_0 : i32, i32
  }
  func.func @transform_6(%arg0: i32) -> (i32, i32) {
    %c0_i32 = arith.constant 0 : i32
    %c0_i32_0 = arith.constant 0 : i32
    %c0_i32_1 = arith.constant 0 : i32
    return %c0_i32, %c0_i32_0 : i32, i32
  }
  func.func @transform_7(%arg0: i32) -> (i32, i32) {
    %c0_i32 = arith.constant 0 : i32
    %c0_i32_0 = arith.constant 0 : i32
    %c0_i32_1 = arith.constant 0 : i32
    return %c0_i32, %c0_i32_0 : i32, i32
  }
  func.func @transform_8(%arg0: i32) -> (i32, i32) {
    %c0_i32 = arith.constant 0 : i32
    %c0_i32_0 = arith.constant 0 : i32
    return %arg0, %c0_i32 : i32, i32
  }
}

</mosaic_0001>

<llo_original>
// kernel: tpu_custom_call.1
$region0: #{tpu_custom_call.1}
  #allocation0 [shape = 'u32[]', space=smem, size = 0x4, offset = 0x4, fixed_abs, tag = 'smem constant byte address 0x4 - core index']
  #allocation1 [shape = 'u32[72,128]{1,0:T(1,128)}', space=vmem, size = 0x9000, scoped, tag = 'internal scratch']
  %s0 = inlined_call_operand.vmem [shape: f32[16,80], index: 0, kind: input, shape index: {}]
  %s1 = inlined_call_operand.vmem [shape: f32[16,80], index: 1, kind: input, shape index: {}]
  %s2 = inlined_call_operand.vmem [shape: f32[80,64], index: 2, kind: input, shape index: {}]
  %s3 = inlined_call_operand.vmem [shape: f32[1,64], index: 3, kind: input, shape index: {}]
  %s4 = inlined_call_operand.vmem [shape: f32[64,32], index: 4, kind: input, shape index: {}]
  %s5 = inlined_call_operand.vmem [shape: f32[1,32], index: 5, kind: input, shape index: {}]
  %s6 = inlined_call_operand.vmem [shape: f32[32,32], index: 6, kind: input, shape index: {}]
  %s7 = inlined_call_operand.vmem [shape: f32[1,32], index: 7, kind: input, shape index: {}]
  %s8 = inlined_call_operand.hbm [shape: f32[16,64], index: 8, kind: output, shape index: {}]
  %s9 = sld [smem:[#allocation0]]
  $region65: #{tpu_custom_call.1} parent=0
    _
  %s11 = ssub.s32 1, %s9
  %s12 = scalar_select 0, %s11, %s9
  $region1: #{tpu_custom_call.1} parent=0
    #allocation2 [shape = 'u8[8192]{0}', space=vmem, size = 0x2000, scoped, tag = 'output window, operand 0']
    #allocation3 [shape = 's32[2]{0}', space=sflag, size = 0x8, scoped, tag = 'scoped memory for tpu_custom_call.1']
    %13 = vsyncpa [#allocation3], 0
    %s14 = scalar_lea.sflag [#allocation3], 1
    %15 = vsyncpa %s14, 0
    loop: start=0, step=1, limit=4
    $region2: #{tpu_custom_call.1} parent=1 // loop_pre_header
      _
    $region3: #{tpu_custom_call.1} parent=1 // loop_header
      %s17 = sphi 0, %s21
      %p18 = scmp.ge.s32.totalorder %s17, 4
      %s27 = sphi 0, %s29
      %s30 = sphi 0, %s27
      %s31 = sphi 0, %s30
      %s47 = sphi 0, %s31
      %s53 = sphi 0, %s55
      %s56 = sphi 0, %s53
      %s57 = sphi 0, %s56
      %s73 = sphi 0, %s57
      %s77 = sphi 0, %s77
      %s79 = sphi 0, %s77
      %s80 = sphi 0, %s79
      %s94 = sphi 0, %s80
      %s98 = sphi 0, %s98
      %s100 = sphi 0, %s98
      %s101 = sphi 0, %s100
      %s115 = sphi 0, %s101
      %s119 = sphi 0, %s119
      %s121 = sphi 0, %s119
      %s122 = sphi 0, %s121
      %s136 = sphi 0, %s122
      %s140 = sphi 0, %s140
      %s142 = sphi 0, %s140
      %s143 = sphi 0, %s142
      %s157 = sphi 0, %s143
      %s161 = sphi 0, %s161
      %s163 = sphi 0, %s161
      %s164 = sphi 0, %s163
      %s178 = sphi 0, %s164
      %s182 = sphi 0, %s182
      %s184 = sphi 0, %s182
      %s185 = sphi 0, %s184
      %s199 = sphi 0, %s185
      %s205 = sphi 0, %s207
      %s208 = sphi 0, %s205
      %s209 = sphi 0, %s208
      %s225 = sphi 0, %s209
    $region4: #{tpu_custom_call.1} parent=1 // loop_header_branch
      %20 = sbr.rel (%p18) target = $region8
    $region5: #{tpu_custom_call.1} parent=1 // loop_body
      %s22 = ssub.s32 %s17, 1
      %s23 = ssub.s32 %s17, 2
      %s24 = sadd.s32 %s17, 1
      %s25 = ssub.s32 %s17, %s24
      %p26 = scmp.eq.s32.totalorder %s25, 0
      %s28 = sadd.s32 %s27, 1
      %s29 = scalar_select %p26, %s27, %s28
      %p32 = pneg %p26
      %p33 = scmp.eq.s32.totalorder %s17, 1
      %p34 = por %p32, %p33
      %p35 = scmp.ne.s32.totalorder %s27, %s30
      %p36 = scmp.eq.s32.totalorder %s17, 0
      %p37 = por %p35, %p36
      %p38 = scmp.ne.s32.totalorder %s27, %s30
      %p39 = scmp.eq.s32.totalorder %s22, 1
      %p40 = por %p38, %p39
      %p41 = scmp.ne.s32.totalorder %s30, %s31
      %p42 = scmp.eq.s32.totalorder %s22, 0
      %p43 = por %p41, %p42
      %p44 = scmp.ne.s32.totalorder %s30, %s31
      %p45 = scmp.eq.s32.totalorder %s23, 1
      %p46 = por %p44, %p45
      %p48 = scmp.ne.s32.totalorder %s31, %s47
      %p49 = scmp.eq.s32.totalorder %s23, 0
      %p50 = por %p48, %p49
      %s51 = ssub.s32 %s17, %s24
      %p52 = scmp.eq.s32.totalorder %s51, 0
      %s54 = sadd.s32 %s53, 1
      %s55 = scalar_select %p52, %s53, %s54
      %p58 = pneg %p52
      %p59 = scmp.eq.s32.totalorder %s17, 1
      %p60 = por %p58, %p59
      %p61 = scmp.ne.s32.totalorder %s53, %s56
      %p62 = scmp.eq.s32.totalorder %s17, 0
      %p63 = por %p61, %p62
      %p64 = scmp.ne.s32.totalorder %s53, %s56
      %p65 = scmp.eq.s32.totalorder %s22, 1
      %p66 = por %p64, %p65
      %p67 = scmp.ne.s32.totalorder %s56, %s57
      %p68 = scmp.eq.s32.totalorder %s22, 0
      %p69 = por %p67, %p68
      %p70 = scmp.ne.s32.totalorder %s56, %s57
      %p71 = scmp.eq.s32.totalorder %s23, 1
      %p72 = por %p70, %p71
      %p74 = scmp.ne.s32.totalorder %s57, %s73
      %p75 = scmp.eq.s32.totalorder %s23, 0
      %p76 = por %p74, %p75
      %s78 = sadd.s32 %s77, 1
      %p81 = scmp.eq.s32.totalorder %s17, 1
      %p82 = scmp.ne.s32.totalorder %s77, %s79
      %p83 = scmp.eq.s32.totalorder %s17, 0
      %p84 = por %p82, %p83
      %p85 = scmp.ne.s32.totalorder %s77, %s79
      %p86 = scmp.eq.s32.totalorder %s22, 1
      %p87 = por %p85, %p86
      %p88 = scmp.ne.s32.totalorder %s79, %s80
      %p89 = scmp.eq.s32.totalorder %s22, 0
      %p90 = por %p88, %p89
      %p91 = scmp.ne.s32.totalorder %s79, %s80
      %p92 = scmp.eq.s32.totalorder %s23, 1
      %p93 = por %p91, %p92
      %p95 = scmp.ne.s32.totalorder %s80, %s94
      %p96 = scmp.eq.s32.totalorder %s23, 0
      %p97 = por %p95, %p96
      %s99 = sadd.s32 %s98, 1
      %p102 = scmp.eq.s32.totalorder %s17, 1
      %p103 = scmp.ne.s32.totalorder %s98, %s100
      %p104 = scmp.eq.s32.totalorder %s17, 0
      %p105 = por %p103, %p104
      %p106 = scmp.ne.s32.totalorder %s98, %s100
      %p107 = scmp.eq.s32.totalorder %s22, 1
      %p108 = por %p106, %p107
      %p109 = scmp.ne.s32.totalorder %s100, %s101
      %p110 = scmp.eq.s32.totalorder %s22, 0
      %p111 = por %p109, %p110
      %p112 = scmp.ne.s32.totalorder %s100, %s101
      %p113 = scmp.eq.s32.totalorder %s23, 1
      %p114 = por %p112, %p113
      %p116 = scmp.ne.s32.totalorder %s101, %s115
      %p117 = scmp.eq.s32.totalorder %s23, 0
      %p118 = por %p116, %p117
      %s120 = sadd.s32 %s119, 1
      %p123 = scmp.eq.s32.totalorder %s17, 1
      %p124 = scmp.ne.s32.totalorder %s119, %s121
      %p125 = scmp.eq.s32.totalorder %s17, 0
      %p126 = por %p124, %p125
      %p127 = scmp.ne.s32.totalorder %s119, %s121
      %p128 = scmp.eq.s32.totalorder %s22, 1
      %p129 = por %p127, %p128
      %p130 = scmp.ne.s32.totalorder %s121, %s122
      %p131 = scmp.eq.s32.totalorder %s22, 0
      %p132 = por %p130, %p131
      %p133 = scmp.ne.s32.totalorder %s121, %s122
      %p134 = scmp.eq.s32.totalorder %s23, 1
      %p135 = por %p133, %p134
      %p137 = scmp.ne.s32.totalorder %s122, %s136
      %p138 = scmp.eq.s32.totalorder %s23, 0
      %p139 = por %p137, %p138
      %s141 = sadd.s32 %s140, 1
      %p144 = scmp.eq.s32.totalorder %s17, 1
      %p145 = scmp.ne.s32.totalorder %s140, %s142
      %p146 = scmp.eq.s32.totalorder %s17, 0
      %p147 = por %p145, %p146
      %p148 = scmp.ne.s32.totalorder %s140, %s142
      %p149 = scmp.eq.s32.totalorder %s22, 1
      %p150 = por %p148, %p149
      %p151 = scmp.ne.s32.totalorder %s142, %s143
      %p152 = scmp.eq.s32.totalorder %s22, 0
      %p153 = por %p151, %p152
      %p154 = scmp.ne.s32.totalorder %s142, %s143
      %p155 = scmp.eq.s32.totalorder %s23, 1
      %p156 = por %p154, %p155
      %p158 = scmp.ne.s32.totalorder %s143, %s157
      %p159 = scmp.eq.s32.totalorder %s23, 0
      %p160 = por %p158, %p159
      %s162 = sadd.s32 %s161, 1
      %p165 = scmp.eq.s32.totalorder %s17, 1
      %p166 = scmp.ne.s32.totalorder %s161, %s163
      %p167 = scmp.eq.s32.totalorder %s17, 0
      %p168 = por %p166, %p167
      %p169 = scmp.ne.s32.totalorder %s161, %s163
      %p170 = scmp.eq.s32.totalorder %s22, 1
      %p171 = por %p169, %p170
      %p172 = scmp.ne.s32.totalorder %s163, %s164
      %p173 = scmp.eq.s32.totalorder %s22, 0
      %p174 = por %p172, %p173
      %p175 = scmp.ne.s32.totalorder %s163, %s164
      %p176 = scmp.eq.s32.totalorder %s23, 1
      %p177 = por %p175, %p176
      %p179 = scmp.ne.s32.totalorder %s164, %s178
      %p180 = scmp.eq.s32.totalorder %s23, 0
      %p181 = por %p179, %p180
      %s183 = sadd.s32 %s182, 1
      %p186 = scmp.eq.s32.totalorder %s17, 1
      %p187 = scmp.ne.s32.totalorder %s182, %s184
      %p188 = scmp.eq.s32.totalorder %s17, 0
      %p189 = por %p187, %p188
      %p190 = scmp.ne.s32.totalorder %s182, %s184
      %p191 = scmp.eq.s32.totalorder %s22, 1
      %p192 = por %p190, %p191
      %p193 = scmp.ne.s32.totalorder %s184, %s185
      %p194 = scmp.eq.s32.totalorder %s22, 0
      %p195 = por %p193, %p194
      %p196 = scmp.ne.s32.totalorder %s184, %s185
      %p197 = scmp.eq.s32.totalorder %s23, 1
      %p198 = por %p196, %p197
      %p200 = scmp.ne.s32.totalorder %s185, %s199
      %p201 = scmp.eq.s32.totalorder %s23, 0
      %p202 = por %p200, %p201
      %s203 = ssub.s32 %s17, %s24
      %p204 = scmp.eq.s32.totalorder %s203, 0
      %s206 = sadd.s32 %s205, 1
      %s207 = scalar_select %p204, %s205, %s206
      %p210 = pneg %p204
      %p211 = scmp.eq.s32.totalorder %s17, 1
      %p212 = por %p210, %p211
      %p213 = scmp.ne.s32.totalorder %s205, %s208
      %p214 = scmp.eq.s32.totalorder %s17, 0
      %p215 = por %p213, %p214
      %p216 = scmp.ne.s32.totalorder %s205, %s208
      %p217 = scmp.eq.s32.totalorder %s22, 1
      %p218 = por %p216, %p217
      %p219 = scmp.ne.s32.totalorder %s208, %s209
      %p220 = scmp.eq.s32.totalorder %s22, 0
      %p221 = por %p219, %p220
      %p222 = scmp.ne.s32.totalorder %s208, %s209
      %p223 = scmp.eq.s32.totalorder %s23, 1
      %p224 = por %p222, %p223
      %p226 = scmp.ne.s32.totalorder %s209, %s225
      %p227 = scmp.eq.s32.totalorder %s23, 0
      %p228 = por %p226, %p227
      %p229 = scmp.le.s32.totalorder 1, %s17
      %p230 = scmp.lt.s32.totalorder %s17, 3
      %p231 = pnand %p229, %p230
      %p232 = pneg %p231
      // Predicated region
      $region9: #{tpu_custom_call.1} parent=5 // pred_check
        _
      $region10: #{tpu_custom_call.1} parent=5 // pred_check_branch
        %234 = sbr.rel (%p231) target = $region12
      $region11: #{tpu_custom_call.1} parent=5 // pred_region
        %s235 = ssub.s32 %s17, 1
        // Predicated region
        $region13: #{tpu_custom_call.1} parent=11 // pred_check
          %p236 = pneg %p90
        $region14: #{tpu_custom_call.1} parent=11 // pred_check_branch
          %238 = sbr.rel (%p236) target = $region16
        $region15: #{tpu_custom_call.1} parent=11 // pred_region
          _
        $region16: #{tpu_custom_call.1} parent=11 // pred_fallthru
          _
        // Predicated region
        $region17: #{tpu_custom_call.1} parent=11 // pred_check
          %p239 = pneg %p111
        $region18: #{tpu_custom_call.1} parent=11 // pred_check_branch
          %241 = sbr.rel (%p239) target = $region20
        $region19: #{tpu_custom_call.1} parent=11 // pred_region
          _
        $region20: #{tpu_custom_call.1} parent=11 // pred_fallthru
          _
        // Predicated region
        $region21: #{tpu_custom_call.1} parent=11 // pred_check
          %p242 = pneg %p132
        $region22: #{tpu_custom_call.1} parent=11 // pred_check_branch
          %244 = sbr.rel (%p242) target = $region24
        $region23: #{tpu_custom_call.1} parent=11 // pred_region
          _
        $region24: #{tpu_custom_call.1} parent=11 // pred_fallthru
          _
        // Predicated region
        $region25: #{tpu_custom_call.1} parent=11 // pred_check
          %p245 = pneg %p153
        $region26: #{tpu_custom_call.1} parent=11 // pred_check_branch
          %247 = sbr.rel (%p245) target = $region28
        $region27: #{tpu_custom_call.1} parent=11 // pred_region
          _
        $region28: #{tpu_custom_call.1} parent=11 // pred_fallthru
          _
        // Predicated region
        $region29: #{tpu_custom_call.1} parent=11 // pred_check
          %p248 = pneg %p174
        $region30: #{tpu_custom_call.1} parent=11 // pred_check_branch
          %250 = sbr.rel (%p248) target = $region32
        $region31: #{tpu_custom_call.1} parent=11 // pred_region
          _
        $region32: #{tpu_custom_call.1} parent=11 // pred_fallthru
          _
        // Predicated region
        $region33: #{tpu_custom_call.1} parent=11 // pred_check
          %p251 = pneg %p195
        $region34: #{tpu_custom_call.1} parent=11 // pred_check_branch
          %253 = sbr.rel (%p251) target = $region36
        $region35: #{tpu_custom_call.1} parent=11 // pred_region
          _
        $region36: #{tpu_custom_call.1} parent=11 // pred_fallthru
          _
      $region12: #{tpu_custom_call.1} parent=5 // pred_fallthru
        _
      %p254 = scmp.lt.s32.totalorder %s17, 2
      // Predicated region
      $region37: #{tpu_custom_call.1} parent=5 // pred_check
        %p255 = pneg %p254
      $region38: #{tpu_custom_call.1} parent=5 // pred_check_branch
        %257 = sbr.rel (%p255) target = $region40
      $region39: #{tpu_custom_call.1} parent=5 // pred_region
        // Predicated region
        $region41: #{tpu_custom_call.1} parent=39 // pred_check
          %p258 = pneg %p37
        $region42: #{tpu_custom_call.1} parent=39 // pred_check_branch
          %260 = sbr.rel (%p258) target = $region44
        $region43: #{tpu_custom_call.1} parent=39 // pred_region
          %p261 = scmp.lt.s32.totalorder %s17, 1
          %s262 = scalar_select %p261, %s17, 1
          %s263 = smul.addr %s262, 8
          %s264 = scalar_lea.vmem %s0, %s263
        $region44: #{tpu_custom_call.1} parent=39 // pred_fallthru
          _
        // Predicated region
        $region45: #{tpu_custom_call.1} parent=39 // pred_check
          %p265 = pneg %p63
        $region46: #{tpu_custom_call.1} parent=39 // pred_check_branch
          %267 = sbr.rel (%p265) target = $region48
        $region47: #{tpu_custom_call.1} parent=39 // pred_region
          %p268 = scmp.lt.s32.totalorder %s17, 1
          %s269 = scalar_select %p268, %s17, 1
          %s270 = smul.addr %s269, 8
          %s271 = scalar_lea.vmem %s1, %s270
        $region48: #{tpu_custom_call.1} parent=39 // pred_fallthru
          _
      $region40: #{tpu_custom_call.1} parent=5 // pred_fallthru
        _
      %p272 = scmp.le.s32.totalorder 1, %s17
      %p273 = scmp.lt.s32.totalorder %s17, 3
      %p274 = pnand %p272, %p273
      %p275 = pneg %p274
      // Predicated region
      $region49: #{tpu_custom_call.1} parent=5 // pred_check
        _
      $region50: #{tpu_custom_call.1} parent=5 // pred_check_branch
        %277 = sbr.rel (%p274) target = $region52
      $region51: #{tpu_custom_call.1} parent=5 // pred_region
        %s278 = ssub.s32 %s17, 1
        %p279 = scmp.lt.s32.totalorder %s22, 1
        %s280 = scalar_select %p279, %s22, 1
        %s281 = smul.addr %s280, 8
        %s282 = scalar_lea.vmem %s0, %s281
        %p283 = pneg %p43
        %p284 = pneg %p40
        %p285 = scmp.lt.s32.totalorder %s22, 1
        %s286 = scalar_select %p285, %s22, 1
        %s287 = smul.addr %s286, 8
        %s288 = scalar_lea.vmem %s1, %s287
        %p289 = pneg %p69
        %p290 = pneg %p66
        %p291 = pneg %p90
        %p292 = pneg %p87
        %p293 = pneg %p111
        %p294 = pneg %p108
        %p295 = pneg %p132
        %p296 = pneg %p129
        %p297 = pneg %p153
        %p298 = pneg %p150
        %p299 = pneg %p174
        %p300 = pneg %p171
        %p301 = pneg %p195
        %p302 = pneg %p192
        %p303 = pneg %p221
        %p304 = pneg %p218
        %s305 = sand.u32 %s208, 1
        %s306 = scalar_lea.sflag [#allocation3], %s305
        %s307 = sand.u32 %s208, 1
        %s308 = smul.addr %s307, 8
        %s309 = scalar_lea.vmem [#allocation2], %s308
        %p310 = scmp.lt.s32.totalorder %s22, 1
        %s311 = scalar_select %p310, %s22, 1
        %s312 = smul.addr %s311, 8
        %s313 = scalar_lea.vmem %s0, %s312
        %p314 = scmp.lt.s32.totalorder %s22, 1
        %s315 = scalar_select %p314, %s22, 1
        %s316 = smul.addr %s315, 8
        %s317 = scalar_lea.vmem %s1, %s316
        %v318 = vld [vmem:[%s313] sm:$0xff]
        %v319 = vld [vmem:[%s317] sm:$0xff]
        %v320 = vld [vmem:[%s2] sm:$0xff]
        %v321 = vld [vmem:[%s2 + $0x8] sm:$0xff]
        %v322 = vld [vmem:[%s2 + $0x10] sm:$0xff]
        %v323 = vld [vmem:[%s2 + $0x18] sm:$0xff]
        %v324 = vld [vmem:[%s2 + $0x20] sm:$0xff]
        %v325 = vld [vmem:[%s2 + $0x28] sm:$0xff]
        %v326 = vld [vmem:[%s2 + $0x30] sm:$0xff]
        %v327 = vld [vmem:[%s2 + $0x38] sm:$0xff]
        %v328 = vld [vmem:[%s2 + $0x40] sm:$0xff]
        %v329 = vld [vmem:[%s2 + $0x48] sm:$0xff]
        %v330 = vld [vmem:[%s3] sm:$0x1]
        %v332 = vperm.slane %v330, 0
        %vm334 = vcmask 654336
        %v336 = vsel %vm334, %v318, 0
        %v339 = vsel %vm334, %v319, 0
        %341 = vmatpush.msra.mxu0 0.0
        %342 = vmatpush.msra.mxu0 0.0
        %343 = vmatpush.msra.mxu0 0.0
        %344 = vmatpush.msra.mxu0 0.0
        %345 = vmatpush.msra.mxu0 0.0
        %346 = vmatpush.msra.mxu0 0.0
        %347 = vmatpush.msra.mxu0 %v329
        %348 = vmatpush.msra.mxu0 %v328
        %349 = vmatpush.msra.mxu0 %v327
        %350 = vmatpush.msra.mxu0 %v326
        %351 = vmatpush.msra.mxu0 %v325
        %352 = vmatpush.msra.mxu0 %v324
        %353 = vmatpush.msra.mxu0 %v323
        %354 = vmatpush.msra.mxu0 %v322
        %355 = vmatpush.msra.mxu0 %v321
        %356 = vmatpush.msra.mxu0 %v320
        %357 = vmatmul.f32.gmra.mxu0 %v336
        %v358 = vpop.f32.mrf.mxu0
        %v359 = vadd.f32 %v332, %v358
        %360 = vmatmul.f32.gmra.mxu0 %v339
        %v361 = vpop.f32.mrf.mxu0
        %v362 = vadd.f32 %v332, %v361
        %363 = vdwg.mxu0
        %v364 = vmax.f32 %v359, 0.0
        %v365 = vmax.f32 %v362, 0.0
        %v366 = vld [vmem:[%s4] sm:$0xff]
        %v367 = vld [vmem:[%s4 + $0x8] sm:$0xff]
        %v368 = vld [vmem:[%s4 + $0x10] sm:$0xff]
        %v369 = vld [vmem:[%s4 + $0x18] sm:$0xff]
        %v370 = vld [vmem:[%s4 + $0x20] sm:$0xff]
        %v371 = vld [vmem:[%s4 + $0x28] sm:$0xff]
        %v372 = vld [vmem:[%s4 + $0x30] sm:$0xff]
        %v373 = vld [vmem:[%s4 + $0x38] sm:$0xff]
        %v374 = vld [vmem:[%s5] sm:$0x1]
        %v376 = vperm.slane %v374, 0
        %vm378 = vcmask 523264
        %v380 = vsel %vm378, %v364, 0
        %v383 = vsel %vm378, %v365, 0
        %385 = vmatpush.msra.mxu0 0.0
        %386 = vmatpush.msra.mxu0 0.0
        %387 = vmatpush.msra.mxu0 0.0
        %388 = vmatpush.msra.mxu0 0.0
        %389 = vmatpush.msra.mxu0 0.0
        %390 = vmatpush.msra.mxu0 0.0
        %391 = vmatpush.msra.mxu0 0.0
        %392 = vmatpush.msra.mxu0 0.0
        %393 = vmatpush.msra.mxu0 %v373
        %394 = vmatpush.msra.mxu0 %v372
        %395 = vmatpush.msra.mxu0 %v371
        %396 = vmatpush.msra.mxu0 %v370
        %397 = vmatpush.msra.mxu0 %v369
        %398 = vmatpush.msra.mxu0 %v368
        %399 = vmatpush.msra.mxu0 %v367
        %400 = vmatpush.msra.mxu0 %v366
        %401 = vmatmul.f32.gmra.mxu0 %v380
        %v402 = vpop.f32.mrf.mxu0
        %v403 = vadd.f32 %v376, %v402
        %404 = vmatmul.f32.gmra.mxu0 %v383
        %v405 = vpop.f32.mrf.mxu0
        %v406 = vadd.f32 %v376, %v405
        %407 = vdwg.mxu0
        %v408 = vmax.f32 %v403, 0.0
        %v409 = vmax.f32 %v406, 0.0
        %v410 = vld [vmem:[%s6] sm:$0xff]
        %v411 = vld [vmem:[%s6 + $0x8] sm:$0xff]
        %v412 = vld [vmem:[%s6 + $0x10] sm:$0xff]
        %v413 = vld [vmem:[%s6 + $0x18] sm:$0xff]
        %v414 = vld [vmem:[%s7] sm:$0x1]
        %v416 = vperm.slane %v414, 0
        %vm418 = vcmask 261120
        %v420 = vsel %vm418, %v408, 0
        %v423 = vsel %vm418, %v409, 0
        %425 = vmatpush.msra.mxu0 0.0
        %426 = vmatpush.msra.mxu0 0.0
        %427 = vmatpush.msra.mxu0 0.0
        %428 = vmatpush.msra.mxu0 0.0
        %429 = vmatpush.msra.mxu0 0.0
        %430 = vmatpush.msra.mxu0 0.0
        %431 = vmatpush.msra.mxu0 0.0
        %432 = vmatpush.msra.mxu0 0.0
        %433 = vmatpush.msra.mxu0 0.0
        %434 = vmatpush.msra.mxu0 0.0
        %435 = vmatpush.msra.mxu0 0.0
        %436 = vmatpush.msra.mxu0 0.0
        %437 = vmatpush.msra.mxu0 %v413
        %438 = vmatpush.msra.mxu0 %v412
        %439 = vmatpush.msra.mxu0 %v411
        %440 = vmatpush.msra.mxu0 %v410
        %441 = vmatmul.f32.gmra.mxu0 %v420
        %v442 = vpop.f32.mrf.mxu0
        %v443 = vadd.f32 %v416, %v442
        %444 = vmatmul.f32.gmra.mxu0 %v423
        %v445 = vpop.f32.mrf.mxu0
        %v446 = vadd.f32 %v416, %v445
        %447 = vdwg.mxu0
        %448 = vst.msk [vmem:[%s309] sm:$0xff] %vm418, %v443
        %450 = vrot.lane.b32.xlu0 %v446, 32
        %v451 = vpop.permute.xlu0 %450
        %vm453 = vcmask 523520
        %454 = vst.msk [vmem:[%s309] sm:$0xff] %vm453, %v451
        %s455 = sand.u32 %s208, 1
        %s456 = scalar_lea.sflag [#allocation3], %s455
        %s457 = sand.u32 %s208, 1
        %s458 = smul.addr %s457, 8
        %s459 = scalar_lea.vmem [#allocation2], %s458
        // Predicated region
        $region53: #{tpu_custom_call.1} parent=51 // pred_check
          %p460 = pneg %p218
        $region54: #{tpu_custom_call.1} parent=51 // pred_check_branch
          %462 = sbr.rel (%p460) target = $region56
        $region55: #{tpu_custom_call.1} parent=51 // pred_region
          %464 = vsyncadd %s456, 0
          %s465 = smul.addr %s22, 8
          %s466 = scalar_lea.hbm %s8, %s465
          %s468 = sshll.u32 %s459, 4
          %s469 = int_to_ptr.vmem [resolvable:$true] %s468
          %s470 = sshll.u32 %s466, 4
          %s471 = int_to_ptr.hbm [resolvable:$true] %s470
          %473 = dma.vmem_to_hbm [thread:$0]  %s469, 128, %s471, %s456
        $region56: #{tpu_custom_call.1} parent=51 // pred_fallthru
          _
      $region52: #{tpu_custom_call.1} parent=5 // pred_fallthru
        _
      %p474 = scmp.le.s32.totalorder 2, %s17
      // Predicated region
      $region57: #{tpu_custom_call.1} parent=5 // pred_check
        %p475 = pneg %p474
      $region58: #{tpu_custom_call.1} parent=5 // pred_check_branch
        %477 = sbr.rel (%p475) target = $region60
      $region59: #{tpu_custom_call.1} parent=5 // pred_region
        %s478 = ssub.s32 %s17, 2
        // Predicated region
        $region61: #{tpu_custom_call.1} parent=59 // pred_check
          %p479 = pneg %p224
        $region62: #{tpu_custom_call.1} parent=59 // pred_check_branch
          %481 = sbr.rel (%p479) target = $region64
        $region63: #{tpu_custom_call.1} parent=59 // pred_region
          %s482 = sand.u32 %s209, 1
          %s483 = scalar_lea.sflag [#allocation3], %s482
          %s484 = sand.u32 %s209, 1
          %s485 = smul.addr %s484, 8
          %s486 = scalar_lea.vmem [#allocation2], %s485
          %488 = dma.done %s483, 128
        $region64: #{tpu_custom_call.1} parent=59 // pred_fallthru
          _
      $region60: #{tpu_custom_call.1} parent=5 // pred_fallthru
        _
    $region6: #{tpu_custom_call.1} parent=1 // loop_footer
      %s21 = sadd.s32 1, %s17
    $region7: #{tpu_custom_call.1} parent=1 // loop_footer_branch
      %16 = sbr.rel target = $region3
    $region8: #{tpu_custom_call.1} parent=1 // loop_exit
      _
    %489 = vsyncpa [#allocation3], 1
    %s490 = scalar_lea.sflag [#allocation3], 1
    %491 = vsyncpa %s490, 1

</llo_original>
